<compile_context>
chip_gen: v7x
topology: tpu7x:2x2x1
jax: 0.10.0
libtpu: 0.0.40
codegen_flags: <defaults>
</compile_context>

<pallas_src>
import functools

import jax
import jax.numpy as jnp
import numpy as np
from jax.experimental import pallas as pl
from jax.experimental.pallas import tpu as pltpu


def _supcon_kernel(f1_ref, f2r_ref, f2t_ref, l1_ref, l2_ref, sel_ref, out_ref,
                   *, inv_temp, d_over_t, tq, b_orig, b_pad):
    i = pl.program_id(0)
    eps = 1e-12

    # Anchor tile of features1, L2-normalized in-kernel (F.normalize).
    f1 = f1_ref[...].astype(jnp.float32)
    n1 = jnp.sqrt(jnp.sum(f1 * f1, axis=1, keepdims=True))
    f1 = f1 / jnp.maximum(n1, eps)

    f2t = f2r_ref[...]                       # (TQ, D) pre-normalized contrast rows
    rhs = f2t_ref[...]                       # (D, B_pad) pre-normalized, transposed

    # One fused MXU push: [f1_tile ; f2_tile] @ f2n^T -> (2*TQ, B_pad).
    lhs = jnp.concatenate([f1, f2t], axis=0)
    adc = jax.lax.dot_general(
        lhs, rhs, (((1,), (0,)), ((), ())),
        preferred_element_type=jnp.float32) * inv_temp
    adc1 = adc[:tq, :]                       # features1 @ features2.T / T
    adc2 = adc[tq:, :]                       # features2 @ features2.T / T

    col_ids = jax.lax.broadcasted_iota(jnp.int32, (tq, b_pad), 1)
    row_ids = jax.lax.broadcasted_iota(jnp.int32, (tq, b_pad), 0) + i * tq
    valid_col = col_ids < b_orig             # padded lanes excluded

    # Row maxima.  lm2 needs no padding mask: for unit-norm rows the diagonal
    # (== inv_temp > 0) always dominates the zero padded columns.
    lm1 = jnp.max(jnp.where(valid_col, adc1, -1e30), axis=1, keepdims=True)
    lm2 = jnp.max(adc2, axis=1, keepdims=True)

    # denominator = sum_{j != i, j valid} exp(adc2 - lm2)
    # (pos2 + neg2 == 1 - eye); diagonal removed via mask, not subtraction,
    # so there is no cancellation at small temperatures.
    exp2 = jnp.exp(adc2 - lm2)
    contrib = jnp.logical_and(col_ids != row_ids, valid_col)
    denom = jnp.sum(jnp.where(contrib, exp2, 0.0), axis=1, keepdims=True)
    log_denom = jnp.log(denom)

    # positives_mask1 from O(B) label vectors (sentinel-padded labels never match).
    mask = (l1_ref[...] == l2_ref[...]).astype(jnp.float32)       # (TQ, B_pad)
    npp = jnp.sum(mask, axis=1, keepdims=True)                    # (TQ, 1)
    # Sum_pos log_probs without materializing logits1 / log_probs.
    rowsum = jnp.sum(adc1 * mask, axis=1, keepdims=True) - npp * (lm1 + log_denom)
    # distance branch folded: log_probs1 = log_probs + d/T.
    rowsum1 = rowsum + d_over_t * npp

    sel = sel_ref[...]                        # (TQ, 1) in {0, 1}
    valid = (npp > 0).astype(jnp.float32)
    sel_v = sel * valid
    unsel_v = (1.0 - sel) * valid
    inv_npp = 1.0 / jnp.where(npp > 0, npp, 1.0)

    s0 = jnp.sum(-rowsum * inv_npp * sel_v)     # sum of selected per-row losses
    s1 = jnp.sum(sel_v)                         # # selected rows
    s2 = jnp.sum(-rowsum1 * inv_npp * unsel_v)  # sum of unselected per-row losses
    s3 = jnp.sum(unsel_v)                       # # unselected rows

    # Lane-dense (8, 128) partial-sum block: values in sublane 0, lanes 0..3.
    lane = jax.lax.broadcasted_iota(jnp.int32, (8, 128), 1)
    sub = jax.lax.broadcasted_iota(jnp.int32, (8, 128), 0)
    vals = jnp.where(lane == 0, s0,
           jnp.where(lane == 1, s1,
           jnp.where(lane == 2, s2,
           jnp.where(lane == 3, s3, 0.0))))
    out_ref[...] = jnp.where(sub == 0, vals, 0.0)


def _pick_tile(b_pad, max_tq=128):
    """Largest multiple-of-8 divisor of b_pad, capped at max_tq.

    With the fused [f1; f2] LHS, TQ=128 gives 256-row MXU pushes (full fill
    on v6e/v7x 2x256 MXUs; two clean passes on v5e's 128-row MXU) and keeps
    several grid steps available for v7x megacore sharding.
    """
    tq = 8
    for cand in range(8, min(b_pad, max_tq) + 1, 8):
        if b_pad % cand == 0:
            tq = cand
    return tq


def _vmem_limit_bytes():
    """~75% of physical VMEM, capped at 100 MiB (64 MiB parts -> 48 MiB)."""
    try:
        cap = int(pltpu.get_tpu_info().vmem_capacity_bytes)
    except Exception:
        cap = 64 * 1024 * 1024
    return int(min(cap * 3 // 4, 100 * 1024 * 1024))


def supcon_loss3(worstk, features1, features2, labels1, labels2,
                 temperature=0.5, distance=0.5, tq=None):
    """JAX wrapper matching SupConLoss3_.forward (tmask is unused upstream)."""
    b, d = features1.shape
    assert features2.shape == (b, d), "forward assumes matching batch sizes"
    f32 = jnp.float32

    # O(B) glue: class ids and the per-row "selected" flag (labels2 in worstk).
    labels1_cls = jnp.argmax(labels1, axis=1).astype(jnp.int32)        # (B,)
    labels2_cls = jnp.asarray(labels2).reshape(-1).astype(jnp.int32)   # (B,)
    worstk_i = jnp.asarray(worstk, dtype=jnp.int32)
    sel = jnp.any(labels2_cls[:, None] == worstk_i[None, :], axis=1).astype(f32)

    # Normalize the contrast set ONCE in the wrapper; keep row-major (streamed
    # LHS for the f2@f2.T half) and transposed (resident MXU RHS) copies.
    f2 = features2.astype(f32)
    f2n = f2 / jnp.maximum(
        jnp.sqrt(jnp.sum(f2 * f2, axis=1, keepdims=True)), 1e-12)

    # Pad the batch (lane) dimension to a multiple of 128 -> lane-dense
    # intermediates and an unmasked resident (D, B_pad) RHS.  Padded labels
    # use sentinels so they never match; padded exp terms are masked in-kernel.
    b_pad = ((b + 127) // 128) * 128
    pad = b_pad - b
    f1_p = jnp.pad(features1.astype(f32), ((0, pad), (0, 0)))
    f2n_p = jnp.pad(f2n, ((0, pad), (0, 0)))
    f2n_T = f2n_p.T                                                    # (D, B_pad)
    l1_col = jnp.pad(labels1_cls, (0, pad), constant_values=-2).reshape(b_pad, 1)
    l2_row = jnp.pad(labels2_cls, (0, pad), constant_values=-1).reshape(1, b_pad)
    sel_col = jnp.pad(sel, (0, pad)).reshape(b_pad, 1)

    if tq is None:
        tq = _pick_tile(b_pad)
    assert b_pad % tq == 0 and tq % 8 == 0, (b_pad, tq)
    nt = b_pad // tq

    kernel = functools.partial(
        _supcon_kernel,
        inv_temp=1.0 / float(temperature),
        d_over_t=float(distance) / float(temperature),
        tq=tq, b_orig=b, b_pad=b_pad)

    partials = pl.pallas_call(
        kernel,
        out_shape=jax.ShapeDtypeStruct((nt * 8, 128), jnp.float32),
        grid=(nt,),
        in_specs=[
            pl.BlockSpec((tq, d), lambda i: (i, 0)),      # raw f1 row tile
            pl.BlockSpec((tq, d), lambda i: (i, 0)),      # normalized f2 row tile
            pl.BlockSpec((d, b_pad), lambda i: (0, 0)),   # resident f2n^T RHS
            pl.BlockSpec((tq, 1), lambda i: (i, 0)),      # labels1 column tile
            pl.BlockSpec((1, b_pad), lambda i: (0, 0)),   # labels2 row (resident)
            pl.BlockSpec((tq, 1), lambda i: (i, 0)),      # selected-row flag tile
        ],
        out_specs=pl.BlockSpec((8, 128), lambda i: (i, 0)),
        compiler_params=pltpu.CompilerParams(
            dimension_semantics=("parallel",),            # per-tile partials
            vmem_limit_bytes=_vmem_limit_bytes()),
    )(f1_p, f2n_p, f2n_T, l1_col, l2_row, sel_col)

    sums = jnp.sum(partials, axis=0)                      # (128,)
    loss = sums[0] / sums[1]
    loss1 = sums[2] / sums[3]
    return loss + loss1


def _reference_loss(worstk, f1, f2, labels1, labels2,
                    temperature=0.5, distance=0.5):
    """Pure-JAX/NumPy mirror of the PyTorch forward (for verification)."""
    hp = jax.lax.Precision.HIGHEST
    f1 = f1 / jnp.maximum(jnp.linalg.norm(f1, axis=1, keepdims=True), 1e-12)
    f2 = f2 / jnp.maximum(jnp.linalg.norm(f2, axis=1, keepdims=True), 1e-12)
    b = f1.shape[0]
    l1 = jnp.argmax(labels1, axis=1).reshape(-1, 1)
    l2 = labels2.reshape(-1, 1)
    mask = (l1 == l2.T).astype(jnp.float32)
    mask2 = (l2 == l2.T).astype(jnp.float32)
    mask3 = jnp.isin(l2.reshape(-1), worstk).astype(jnp.float32)
    mask4 = 1.0 - mask3
    g12 = jnp.matmul(f1, f2.T, precision=hp)
    g22 = jnp.matmul(f2, f2.T, precision=hp)
    adc1 = g12 / temperature
    adc2 = g22 / temperature
    adc3 = (g22 - distance) / temperature
    lm1 = jnp.max(adc1, axis=1, keepdims=True)
    lm2 = jnp.max(adc2, axis=1, keepdims=True)
    logits1 = adc1 - lm1
    logits2 = adc2 - lm2
    logits3 = adc3 - lm2
    e2, e3 = jnp.exp(logits2), jnp.exp(logits3)
    lmask2 = jnp.ones((b, b)) - jnp.eye(b)
    pos1 = mask
    pos2 = mask2 * lmask2
    neg2 = 1.0 - mask2
    npp = jnp.sum(pos1, axis=1)
    npp_sel = mask3 * npp
    npp_unsel = mask4 * npp
    denom = jnp.sum(e2 * neg2, 1, keepdims=True) + jnp.sum(e2 * pos2, 1, keepdims=True)
    denom1 = jnp.sum(e3 * neg2, 1, keepdims=True) + jnp.sum(e3 * pos2, 1, keepdims=True)
    lp = logits1 - jnp.log(denom)
    lp1 = logits1 - jnp.log(denom1)
    s = jnp.sum(lp * pos1, axis=1)
    s1 = jnp.sum(lp1 * pos1, axis=1)
    sel = np.asarray(npp_sel) > 0
    unsel = np.asarray(npp_unsel) > 0
    loss = -(np.asarray(s)[sel] / np.asarray(npp_sel)[sel]).mean()
    loss1 = -(np.asarray(s1)[unsel] / np.asarray(npp_unsel)[unsel]).mean()
    return loss + loss1


if __name__ == "__main__":
    # B not a multiple of 128 -> exercises the lane-padding path; TQ=64 gives
    # two row tiles (two partial-sum blocks reduced in the wrapper).
    B, D, C, TQ = 96, 128, 4, 64
    key = jax.random.PRNGKey(0)
    k1, k2 = jax.random.split(key)

    features1 = jax.random.normal(k1, (B, D), dtype=jnp.float32)
    features2 = jax.random.normal(k2, (B, D), dtype=jnp.float32)

    # Deterministic labels: every class appears 24x; worstk selects classes
    # {0,1} so both the "selected" and "unselected" groups are non-empty.
    labels1_cls = jnp.arange(B, dtype=jnp.int32) % C
    labels1 = jax.nn.one_hot(labels1_cls, C, dtype=jnp.float32)        # (B, C)
    labels2 = (jnp.arange(B, dtype=jnp.int32) + 1) % C                 # (B,)
    worstk = jnp.array([0, 1], dtype=jnp.int32)

    out = supcon_loss3(worstk, features1, features2, labels1, labels2, tq=TQ)
    out = jax.block_until_ready(out)

    ref = _reference_loss(worstk, features1, features2, labels1, labels2)
    assert np.allclose(np.asarray(out), np.asarray(ref), rtol=2e-3, atol=2e-3), (
        f"mismatch: pallas={float(out)} ref={float(ref)}")

    print("KERNEL_OK")
</pallas_src>

<mosaic_0001>
module attributes {stable_mosaic.version = 11 : i64} {
  func.func @_supcon_kernel(%arg0: i32, %arg1: memref<64x128xf32, #tpu.memory_space<vmem>>, %arg2: memref<64x128xf32, #tpu.memory_space<vmem>>, %arg3: memref<128x128xf32, #tpu.memory_space<vmem>>, %arg4: memref<64x1xi32, #tpu.memory_space<vmem>>, %arg5: memref<1x128xi32, #tpu.memory_space<vmem>>, %arg6: memref<64x1xf32, #tpu.memory_space<vmem>>, %arg7: memref<8x128xf32, #tpu.memory_space<vmem>>) attributes {dimension_semantics = [#tpu.dimension_semantics<parallel>], iteration_bounds = array<i64: 2>, scalar_prefetch = 0 : i64, scratch_operands = 0 : i64, tpu.core_type = #tpu.core_type<tc>, window_params = [{transform_indices = @transform_0, window_bounds = array<i64: 64, 128>}, {transform_indices = @transform_1, window_bounds = array<i64: 64, 128>}, {pipeline_mode = #tpu.pipeline_mode<synchronous>, transform_indices = @transform_2, window_bounds = array<i64: 128, 128>}, {transform_indices = @transform_3, window_bounds = array<i64: 64, 1>}, {pipeline_mode = #tpu.pipeline_mode<synchronous>, transform_indices = @transform_4, window_bounds = array<i64: 1, 128>}, {transform_indices = @transform_5, window_bounds = array<i64: 64, 1>}, {transform_indices = @transform_6, window_bounds = array<i64: 8, 128>}]} {
    %c0 = arith.constant 0 : index
    %c0_0 = arith.constant 0 : index
    %0 = vector.load %arg1[%c0, %c0_0] : memref<64x128xf32, #tpu.memory_space<vmem>>, vector<64x128xf32>
    %1 = arith.mulf %0, %0 : vector<64x128xf32>
    %cst = arith.constant dense<0.000000e+00> : vector<64xf32>
    %2 = vector.multi_reduction <add>, %1, %cst [1] : vector<64x128xf32> to vector<64xf32>
    %3 = vector.shape_cast %2 : vector<64xf32> to vector<64x1xf32>
    %4 = math.sqrt %3 : vector<64x1xf32>
    %cst_1 = arith.constant 9.99999996E-13 : f32
    %5 = vector.broadcast %cst_1 : f32 to vector<64x1xf32>
    %6 = arith.maximumf %4, %5 : vector<64x1xf32>
    %7 = vector.broadcast %6 : vector<64x1xf32> to vector<64x128xf32>
    %8 = arith.divf %0, %7 : vector<64x128xf32>
    %c0_2 = arith.constant 0 : index
    %c0_3 = arith.constant 0 : index
    %9 = vector.load %arg2[%c0_2, %c0_3] : memref<64x128xf32, #tpu.memory_space<vmem>>, vector<64x128xf32>
    %c0_4 = arith.constant 0 : index
    %c0_5 = arith.constant 0 : index
    %10 = vector.load %arg3[%c0_4, %c0_5] : memref<128x128xf32, #tpu.memory_space<vmem>>, vector<128x128xf32>
    %11 = tpu.concatenate %8, %9 in 0 : vector<64x128xf32>, vector<64x128xf32> -> vector<128x128xf32>
    %cst_6 = arith.constant dense<0.000000e+00> : vector<128x128xf32>
    %12 = tpu.matmul %11, %10, %cst_6 {dimension_numbers = #tpu.dot_dimension_numbers<[1], [0], [0], [1], [0, 0, 1, 1], [], []>} : vector<128x128xf32>, vector<128x128xf32>, vector<128x128xf32> -> vector<128x128xf32>
    %cst_7 = arith.constant 2.000000e+00 : f32
    %13 = vector.broadcast %cst_7 : f32 to vector<128x128xf32>
    %14 = arith.mulf %12, %13 : vector<128x128xf32>
    %15 = vector.extract_strided_slice %14 {offsets = [0, 0], sizes = [64, 128], strides = [1, 1]} : vector<128x128xf32> to vector<64x128xf32>
    %16 = vector.extract_strided_slice %14 {offsets = [64, 0], sizes = [64, 128], strides = [1, 1]} : vector<128x128xf32> to vector<64x128xf32>
    %17 = tpu.iota {dimensions = array<i32: 1>} : vector<64x128xi32>
    %18 = tpu.iota {dimensions = array<i32: 0>} : vector<64x128xi32>
    %c64_i32 = arith.constant 64 : i32
    %19 = arith.muli %arg0, %c64_i32 : i32
    %20 = vector.broadcast %19 : i32 to vector<64x128xi32>
    %21 = arith.addi %18, %20 : vector<64x128xi32>
    %c96_i32 = arith.constant 96 : i32
    %22 = vector.broadcast %c96_i32 : i32 to vector<64x128xi32>
    %23 = arith.cmpi slt, %17, %22 : vector<64x128xi32>
    %cst_8 = arith.constant -1.000000e+30 : f32
    %24 = vector.broadcast %cst_8 : f32 to vector<64x128xf32>
    %25 = arith.select %23, %15, %24 : vector<64x128xi1>, vector<64x128xf32>
    %cst_9 = arith.constant dense<0xFF800000> : vector<64xf32>
    %26 = vector.multi_reduction <maximumf>, %25, %cst_9 [1] : vector<64x128xf32> to vector<64xf32>
    %27 = vector.shape_cast %26 : vector<64xf32> to vector<64x1xf32>
    %cst_10 = arith.constant dense<0xFF800000> : vector<64xf32>
    %28 = vector.multi_reduction <maximumf>, %16, %cst_10 [1] : vector<64x128xf32> to vector<64xf32>
    %29 = vector.shape_cast %28 : vector<64xf32> to vector<64x1xf32>
    %30 = vector.broadcast %29 : vector<64x1xf32> to vector<64x128xf32>
    %31 = arith.subf %16, %30 : vector<64x128xf32>
    %32 = math.exp %31 : vector<64x128xf32>
    %33 = arith.cmpi ne, %17, %21 : vector<64x128xi32>
    %34 = arith.andi %33, %23 : vector<64x128xi1>
    %cst_11 = arith.constant 0.000000e+00 : f32
    %35 = vector.broadcast %cst_11 : f32 to vector<64x128xf32>
    %36 = arith.select %34, %32, %35 : vector<64x128xi1>, vector<64x128xf32>
    %cst_12 = arith.constant dense<0.000000e+00> : vector<64xf32>
    %37 = vector.multi_reduction <add>, %36, %cst_12 [1] : vector<64x128xf32> to vector<64xf32>
    %38 = vector.shape_cast %37 : vector<64xf32> to vector<64x1xf32>
    %39 = math.log %38 : vector<64x1xf32>
    %c0_13 = arith.constant 0 : index
    %c0_14 = arith.constant 0 : index
    %40 = vector.load %arg4[%c0_13, %c0_14] : memref<64x1xi32, #tpu.memory_space<vmem>>, vector<64x1xi32>
    %c0_15 = arith.constant 0 : index
    %c0_16 = arith.constant 0 : index
    %41 = vector.load %arg5[%c0_15, %c0_16] : memref<1x128xi32, #tpu.memory_space<vmem>>, vector<1x128xi32>
    %42 = vector.broadcast %40 : vector<64x1xi32> to vector<64x128xi32>
    %43 = vector.broadcast %41 : vector<1x128xi32> to vector<64x128xi32>
    %44 = arith.cmpi eq, %42, %43 : vector<64x128xi32>
    %45 = arith.extui %44 : vector<64x128xi1> to vector<64x128xi32>
    %46 = arith.sitofp %45 : vector<64x128xi32> to vector<64x128xf32>
    %cst_17 = arith.constant dense<0.000000e+00> : vector<64xf32>
    %47 = vector.multi_reduction <add>, %46, %cst_17 [1] : vector<64x128xf32> to vector<64xf32>
    %48 = vector.shape_cast %47 : vector<64xf32> to vector<64x1xf32>
    %49 = arith.mulf %15, %46 : vector<64x128xf32>
    %cst_18 = arith.constant dense<0.000000e+00> : vector<64xf32>
    %50 = vector.multi_reduction <add>, %49, %cst_18 [1] : vector<64x128xf32> to vector<64xf32>
    %51 = vector.shape_cast %50 : vector<64xf32> to vector<64x1xf32>
    %52 = arith.addf %27, %39 : vector<64x1xf32>
    %53 = arith.mulf %48, %52 : vector<64x1xf32>
    %54 = arith.subf %51, %53 : vector<64x1xf32>
    %cst_19 = arith.constant 1.000000e+00 : f32
    %55 = vector.broadcast %cst_19 : f32 to vector<64x1xf32>
    %56 = arith.mulf %55, %48 : vector<64x1xf32>
    %57 = arith.addf %54, %56 : vector<64x1xf32>
    %c0_20 = arith.constant 0 : index
    %c0_21 = arith.constant 0 : index
    %58 = vector.load %arg6[%c0_20, %c0_21] : memref<64x1xf32, #tpu.memory_space<vmem>>, vector<64x1xf32>
    %cst_22 = arith.constant 0.000000e+00 : f32
    %59 = vector.broadcast %cst_22 : f32 to vector<64x1xf32>
    %60 = arith.cmpf ogt, %48, %59 : vector<64x1xf32>
    %61 = arith.extui %60 : vector<64x1xi1> to vector<64x1xi32>
    %62 = arith.sitofp %61 : vector<64x1xi32> to vector<64x1xf32>
    %63 = arith.mulf %58, %62 : vector<64x1xf32>
    %cst_23 = arith.constant 1.000000e+00 : f32
    %64 = vector.broadcast %cst_23 : f32 to vector<64x1xf32>
    %65 = arith.subf %64, %58 : vector<64x1xf32>
    %66 = arith.mulf %65, %62 : vector<64x1xf32>
    %cst_24 = arith.constant 0.000000e+00 : f32
    %67 = vector.broadcast %cst_24 : f32 to vector<64x1xf32>
    %68 = arith.cmpf ogt, %48, %67 : vector<64x1xf32>
    %cst_25 = arith.constant 1.000000e+00 : f32
    %69 = vector.broadcast %cst_25 : f32 to vector<64x1xf32>
    %70 = arith.select %68, %48, %69 : vector<64x1xi1>, vector<64x1xf32>
    %cst_26 = arith.constant 1.000000e+00 : f32
    %71 = vector.broadcast %cst_26 : f32 to vector<64x1xf32>
    %72 = arith.divf %71, %70 : vector<64x1xf32>
    %cst_27 = arith.constant 0.000000e+00 : f32
    %73 = vector.broadcast %cst_27 : f32 to vector<64x1xf32>
    %74 = arith.subf %73, %54 : vector<64x1xf32>
    %75 = arith.mulf %74, %72 : vector<64x1xf32>
    %76 = arith.mulf %75, %63 : vector<64x1xf32>
    %77 = vector.shape_cast %76 : vector<64x1xf32> to vector<1x64x1xf32>
    %cst_28 = arith.constant dense<0.000000e+00> : vector<1xf32>
    %78 = vector.multi_reduction <add>, %77, %cst_28 [1, 2] : vector<1x64x1xf32> to vector<1xf32>
    %79 = vector.shape_cast %78 : vector<1xf32> to vector<1x1x1xf32>
    %80 = vector.extract %79[0, 0, 0] : f32 from vector<1x1x1xf32>
    %81 = vector.shape_cast %63 : vector<64x1xf32> to vector<1x64x1xf32>
    %cst_29 = arith.constant dense<0.000000e+00> : vector<1xf32>
    %82 = vector.multi_reduction <add>, %81, %cst_29 [1, 2] : vector<1x64x1xf32> to vector<1xf32>
    %83 = vector.shape_cast %82 : vector<1xf32> to vector<1x1x1xf32>
    %84 = vector.extract %83[0, 0, 0] : f32 from vector<1x1x1xf32>
    %cst_30 = arith.constant 0.000000e+00 : f32
    %85 = vector.broadcast %cst_30 : f32 to vector<64x1xf32>
    %86 = arith.subf %85, %57 : vector<64x1xf32>
    %87 = arith.mulf %86, %72 : vector<64x1xf32>
    %88 = arith.mulf %87, %66 : vector<64x1xf32>
    %89 = vector.shape_cast %88 : vector<64x1xf32> to vector<1x64x1xf32>
    %cst_31 = arith.constant dense<0.000000e+00> : vector<1xf32>
    %90 = vector.multi_reduction <add>, %89, %cst_31 [1, 2] : vector<1x64x1xf32> to vector<1xf32>
    %91 = vector.shape_cast %90 : vector<1xf32> to vector<1x1x1xf32>
    %92 = vector.extract %91[0, 0, 0] : f32 from vector<1x1x1xf32>
    %93 = vector.shape_cast %66 : vector<64x1xf32> to vector<1x64x1xf32>
    %cst_32 = arith.constant dense<0.000000e+00> : vector<1xf32>
    %94 = vector.multi_reduction <add>, %93, %cst_32 [1, 2] : vector<1x64x1xf32> to vector<1xf32>
    %95 = vector.shape_cast %94 : vector<1xf32> to vector<1x1x1xf32>
    %96 = vector.extract %95[0, 0, 0] : f32 from vector<1x1x1xf32>
    %97 = tpu.iota {dimensions = array<i32: 1>} : vector<8x128xi32>
    %98 = tpu.iota {dimensions = array<i32: 0>} : vector<8x128xi32>
    %c0_i32 = arith.constant 0 : i32
    %99 = vector.broadcast %c0_i32 : i32 to vector<8x128xi32>
    %100 = arith.cmpi eq, %97, %99 : vector<8x128xi32>
    %c1_i32 = arith.constant 1 : i32
    %101 = vector.broadcast %c1_i32 : i32 to vector<8x128xi32>
    %102 = arith.cmpi eq, %97, %101 : vector<8x128xi32>
    %c2_i32 = arith.constant 2 : i32
    %103 = vector.broadcast %c2_i32 : i32 to vector<8x128xi32>
    %104 = arith.cmpi eq, %97, %103 : vector<8x128xi32>
    %c3_i32 = arith.constant 3 : i32
    %105 = vector.broadcast %c3_i32 : i32 to vector<8x128xi32>
    %106 = arith.cmpi eq, %97, %105 : vector<8x128xi32>
    %cst_33 = arith.constant 0.000000e+00 : f32
    %107 = vector.broadcast %96 : f32 to vector<8x128xf32>
    %108 = vector.broadcast %cst_33 : f32 to vector<8x128xf32>
    %109 = arith.select %106, %107, %108 : vector<8x128xi1>, vector<8x128xf32>
    %110 = vector.broadcast %92 : f32 to vector<8x128xf32>
    %111 = arith.select %104, %110, %109 : vector<8x128xi1>, vector<8x128xf32>
    %112 = vector.broadcast %84 : f32 to vector<8x128xf32>
    %113 = arith.select %102, %112, %111 : vector<8x128xi1>, vector<8x128xf32>
    %114 = vector.broadcast %80 : f32 to vector<8x128xf32>
    %115 = arith.select %100, %114, %113 : vector<8x128xi1>, vector<8x128xf32>
    %c0_i32_34 = arith.constant 0 : i32
    %116 = vector.broadcast %c0_i32_34 : i32 to vector<8x128xi32>
    %117 = arith.cmpi eq, %98, %116 : vector<8x128xi32>
    %cst_35 = arith.constant 0.000000e+00 : f32
    %118 = vector.broadcast %cst_35 : f32 to vector<8x128xf32>
    %119 = arith.select %117, %115, %118 : vector<8x128xi1>, vector<8x128xf32>
    %c0_36 = arith.constant 0 : index
    %c0_37 = arith.constant 0 : index
    %120 = vector.load %arg7[%c0_36, %c0_37] : memref<8x128xf32, #tpu.memory_space<vmem>>, vector<8x128xf32>
    tpu.vector_store %arg7[%c0_36, %c0_37], %119 {strides = array<i32>} : memref<8x128xf32, #tpu.memory_space<vmem>>, vector<8x128xf32>,
    return
  }
  func.func @transform_0(%arg0: i32) -> (i32, i32) {
    %c0_i32 = arith.constant 0 : i32
    %c0_i32_0 = arith.constant 0 : i32
    return %arg0, %c0_i32 : i32, i32
  }
  func.func @transform_1(%arg0: i32) -> (i32, i32) {
    %c0_i32 = arith.constant 0 : i32
    %c0_i32_0 = arith.constant 0 : i32
    return %arg0, %c0_i32 : i32, i32
  }
  func.func @transform_2(%arg0: i32) -> (i32, i32) {
    %c0_i32 = arith.constant 0 : i32
    %c0_i32_0 = arith.constant 0 : i32
    %c0_i32_1 = arith.constant 0 : i32
    return %c0_i32, %c0_i32_0 : i32, i32
  }
  func.func @transform_3(%arg0: i32) -> (i32, i32) {
    %c0_i32 = arith.constant 0 : i32
    %c0_i32_0 = arith.constant 0 : i32
    return %arg0, %c0_i32 : i32, i32
  }
  func.func @transform_4(%arg0: i32) -> (i32, i32) {
    %c0_i32 = arith.constant 0 : i32
    %c0_i32_0 = arith.constant 0 : i32
    %c0_i32_1 = arith.constant 0 : i32
    return %c0_i32, %c0_i32_0 : i32, i32
  }
  func.func @transform_5(%arg0: i32) -> (i32, i32) {
    %c0_i32 = arith.constant 0 : i32
    %c0_i32_0 = arith.constant 0 : i32
    return %arg0, %c0_i32 : i32, i32
  }
  func.func @transform_6(%arg0: i32) -> (i32, i32) {
    %c0_i32 = arith.constant 0 : i32
    %c0_i32_0 = arith.constant 0 : i32
    return %arg0, %c0_i32 : i32, i32
  }
}

</mosaic_0001>

<llo_original>
// kernel: tpu_custom_call.1
$region0: #{tpu_custom_call.1}
  #allocation0 [shape = 'u32[]', space=smem, size = 0x4, offset = 0x4, fixed_abs, tag = 'smem constant byte address 0x4 - core index']
  #allocation1 [shape = 'u32[144,128]{1,0:T(1,128)}', space=vmem, size = 0x12000, scoped, tag = 'internal scratch']
  %s0 = inlined_call_operand.vmem [shape: f32[128,128], index: 0, kind: input, shape index: {}]
  %s1 = inlined_call_operand.vmem [shape: f32[128,128], index: 1, kind: input, shape index: {}]
  %s2 = inlined_call_operand.hbm [shape: f32[128,128], index: 2, kind: input, shape index: {}]
  %s3 = inlined_call_operand.vmem [shape: s32[128,1], index: 3, kind: input, shape index: {}]
  %s4 = inlined_call_operand.vmem [shape: s32[1,128], index: 4, kind: input, shape index: {}]
  %s5 = inlined_call_operand.vmem [shape: f32[128,1], index: 5, kind: input, shape index: {}]
  %s6 = inlined_call_operand.hbm [shape: f32[16,128], index: 6, kind: output, shape index: {}]
  %s7 = sld [smem:[#allocation0]]
  $region61: #{tpu_custom_call.1} parent=0
    _
  %s9 = ssub.s32 1, %s7
  %s10 = scalar_select 0, %s9, %s7
  $region1: #{tpu_custom_call.1} parent=0
    #allocation2 [shape = 'u8[65536]{0}', space=vmem, size = 0x10000, scoped, tag = 'input window, operand 2, single buffered']
    #allocation3 [shape = 's32[2]{0}', space=sflag, size = 0x8, scoped, tag = 'scoped memory for tpu_custom_call.1']
    #allocation4 [shape = 's32[2]{0}', space=sflag, size = 0x8, scoped, tag = 'scoped memory for tpu_custom_call.1']
    #allocation5 [shape = 'u8[8192]{0}', space=vmem, size = 0x2000, scoped, tag = 'output window, operand 0']
    %11 = vsyncpa [#allocation3], 0
    %12 = vsyncpa [#allocation4], 0
    %s13 = scalar_lea.sflag [#allocation4], 1
    %14 = vsyncpa %s13, 0
    loop: start=0, step=1, limit=4
    $region2: #{tpu_custom_call.1} parent=1 // loop_pre_header
      _
    $region3: #{tpu_custom_call.1} parent=1 // loop_header
      %s16 = sphi 0, %s20
      %p17 = scmp.ge.s32.totalorder %s16, 4
      %s26 = sphi 0, %s28
      %s29 = sphi 0, %s26
      %s30 = sphi 0, %s29
      %s46 = sphi 0, %s30
      %s52 = sphi 0, %s54
      %s55 = sphi 0, %s52
      %s56 = sphi 0, %s55
      %s72 = sphi 0, %s56
      %s76 = sphi 0, %s76
      %s78 = sphi 0, %s76
      %s79 = sphi 0, %s78
      %s93 = sphi 0, %s79
      %s99 = sphi 0, %s101
      %s102 = sphi 0, %s99
      %s103 = sphi 0, %s102
      %s119 = sphi 0, %s103
      %s123 = sphi 0, %s123
      %s125 = sphi 0, %s123
      %s126 = sphi 0, %s125
      %s140 = sphi 0, %s126
      %s146 = sphi 0, %s148
      %s149 = sphi 0, %s146
      %s150 = sphi 0, %s149
      %s166 = sphi 0, %s150
      %s172 = sphi 0, %s174
      %s175 = sphi 0, %s172
      %s176 = sphi 0, %s175
      %s192 = sphi 0, %s176
    $region4: #{tpu_custom_call.1} parent=1 // loop_header_branch
      %19 = sbr.rel (%p17) target = $region8
    $region5: #{tpu_custom_call.1} parent=1 // loop_body
      %s21 = ssub.s32 %s16, 1
      %s22 = ssub.s32 %s16, 2
      %s23 = sadd.s32 %s16, 1
      %s24 = ssub.s32 %s16, %s23
      %p25 = scmp.eq.s32.totalorder %s24, 0
      %s27 = sadd.s32 %s26, 1
      %s28 = scalar_select %p25, %s26, %s27
      %p31 = pneg %p25
      %p32 = scmp.eq.s32.totalorder %s16, 1
      %p33 = por %p31, %p32
      %p34 = scmp.ne.s32.totalorder %s26, %s29
      %p35 = scmp.eq.s32.totalorder %s16, 0
      %p36 = por %p34, %p35
      %p37 = scmp.ne.s32.totalorder %s26, %s29
      %p38 = scmp.eq.s32.totalorder %s21, 1
      %p39 = por %p37, %p38
      %p40 = scmp.ne.s32.totalorder %s29, %s30
      %p41 = scmp.eq.s32.totalorder %s21, 0
      %p42 = por %p40, %p41
      %p43 = scmp.ne.s32.totalorder %s29, %s30
      %p44 = scmp.eq.s32.totalorder %s22, 1
      %p45 = por %p43, %p44
      %p47 = scmp.ne.s32.totalorder %s30, %s46
      %p48 = scmp.eq.s32.totalorder %s22, 0
      %p49 = por %p47, %p48
      %s50 = ssub.s32 %s16, %s23
      %p51 = scmp.eq.s32.totalorder %s50, 0
      %s53 = sadd.s32 %s52, 1
      %s54 = scalar_select %p51, %s52, %s53
      %p57 = pneg %p51
      %p58 = scmp.eq.s32.totalorder %s16, 1
      %p59 = por %p57, %p58
      %p60 = scmp.ne.s32.totalorder %s52, %s55
      %p61 = scmp.eq.s32.totalorder %s16, 0
      %p62 = por %p60, %p61
      %p63 = scmp.ne.s32.totalorder %s52, %s55
      %p64 = scmp.eq.s32.totalorder %s21, 1
      %p65 = por %p63, %p64
      %p66 = scmp.ne.s32.totalorder %s55, %s56
      %p67 = scmp.eq.s32.totalorder %s21, 0
      %p68 = por %p66, %p67
      %p69 = scmp.ne.s32.totalorder %s55, %s56
      %p70 = scmp.eq.s32.totalorder %s22, 1
      %p71 = por %p69, %p70
      %p73 = scmp.ne.s32.totalorder %s56, %s72
      %p74 = scmp.eq.s32.totalorder %s22, 0
      %p75 = por %p73, %p74
      %s77 = sadd.s32 %s76, 1
      %p80 = scmp.eq.s32.totalorder %s16, 1
      %p81 = scmp.ne.s32.totalorder %s76, %s78
      %p82 = scmp.eq.s32.totalorder %s16, 0
      %p83 = por %p81, %p82
      %p84 = scmp.ne.s32.totalorder %s76, %s78
      %p85 = scmp.eq.s32.totalorder %s21, 1
      %p86 = por %p84, %p85
      %p87 = scmp.ne.s32.totalorder %s78, %s79
      %p88 = scmp.eq.s32.totalorder %s21, 0
      %p89 = por %p87, %p88
      %p90 = scmp.ne.s32.totalorder %s78, %s79
      %p91 = scmp.eq.s32.totalorder %s22, 1
      %p92 = por %p90, %p91
      %p94 = scmp.ne.s32.totalorder %s79, %s93
      %p95 = scmp.eq.s32.totalorder %s22, 0
      %p96 = por %p94, %p95
      %s97 = ssub.s32 %s16, %s23
      %p98 = scmp.eq.s32.totalorder %s97, 0
      %s100 = sadd.s32 %s99, 1
      %s101 = scalar_select %p98, %s99, %s100
      %p104 = pneg %p98
      %p105 = scmp.eq.s32.totalorder %s16, 1
      %p106 = por %p104, %p105
      %p107 = scmp.ne.s32.totalorder %s99, %s102
      %p108 = scmp.eq.s32.totalorder %s16, 0
      %p109 = por %p107, %p108
      %p110 = scmp.ne.s32.totalorder %s99, %s102
      %p111 = scmp.eq.s32.totalorder %s21, 1
      %p112 = por %p110, %p111
      %p113 = scmp.ne.s32.totalorder %s102, %s103
      %p114 = scmp.eq.s32.totalorder %s21, 0
      %p115 = por %p113, %p114
      %p116 = scmp.ne.s32.totalorder %s102, %s103
      %p117 = scmp.eq.s32.totalorder %s22, 1
      %p118 = por %p116, %p117
      %p120 = scmp.ne.s32.totalorder %s103, %s119
      %p121 = scmp.eq.s32.totalorder %s22, 0
      %p122 = por %p120, %p121
      %s124 = sadd.s32 %s123, 1
      %p127 = scmp.eq.s32.totalorder %s16, 1
      %p128 = scmp.ne.s32.totalorder %s123, %s125
      %p129 = scmp.eq.s32.totalorder %s16, 0
      %p130 = por %p128, %p129
      %p131 = scmp.ne.s32.totalorder %s123, %s125
      %p132 = scmp.eq.s32.totalorder %s21, 1
      %p133 = por %p131, %p132
      %p134 = scmp.ne.s32.totalorder %s125, %s126
      %p135 = scmp.eq.s32.totalorder %s21, 0
      %p136 = por %p134, %p135
      %p137 = scmp.ne.s32.totalorder %s125, %s126
      %p138 = scmp.eq.s32.totalorder %s22, 1
      %p139 = por %p137, %p138
      %p141 = scmp.ne.s32.totalorder %s126, %s140
      %p142 = scmp.eq.s32.totalorder %s22, 0
      %p143 = por %p141, %p142
      %s144 = ssub.s32 %s16, %s23
      %p145 = scmp.eq.s32.totalorder %s144, 0
      %s147 = sadd.s32 %s146, 1
      %s148 = scalar_select %p145, %s146, %s147
      %p151 = pneg %p145
      %p152 = scmp.eq.s32.totalorder %s16, 1
      %p153 = por %p151, %p152
      %p154 = scmp.ne.s32.totalorder %s146, %s149
      %p155 = scmp.eq.s32.totalorder %s16, 0
      %p156 = por %p154, %p155
      %p157 = scmp.ne.s32.totalorder %s146, %s149
      %p158 = scmp.eq.s32.totalorder %s21, 1
      %p159 = por %p157, %p158
      %p160 = scmp.ne.s32.totalorder %s149, %s150
      %p161 = scmp.eq.s32.totalorder %s21, 0
      %p162 = por %p160, %p161
      %p163 = scmp.ne.s32.totalorder %s149, %s150
      %p164 = scmp.eq.s32.totalorder %s22, 1
      %p165 = por %p163, %p164
      %p167 = scmp.ne.s32.totalorder %s150, %s166
      %p168 = scmp.eq.s32.totalorder %s22, 0
      %p169 = por %p167, %p168
      %s170 = ssub.s32 %s16, %s23
      %p171 = scmp.eq.s32.totalorder %s170, 0
      %s173 = sadd.s32 %s172, 1
      %s174 = scalar_select %p171, %s172, %s173
      %p177 = pneg %p171
      %p178 = scmp.eq.s32.totalorder %s16, 1
      %p179 = por %p177, %p178
      %p180 = scmp.ne.s32.totalorder %s172, %s175
      %p181 = scmp.eq.s32.totalorder %s16, 0
      %p182 = por %p180, %p181
      %p183 = scmp.ne.s32.totalorder %s172, %s175
      %p184 = scmp.eq.s32.totalorder %s21, 1
      %p185 = por %p183, %p184
      %p186 = scmp.ne.s32.totalorder %s175, %s176
      %p187 = scmp.eq.s32.totalorder %s21, 0
      %p188 = por %p186, %p187
      %p189 = scmp.ne.s32.totalorder %s175, %s176
      %p190 = scmp.eq.s32.totalorder %s22, 1
      %p191 = por %p189, %p190
      %p193 = scmp.ne.s32.totalorder %s176, %s192
      %p194 = scmp.eq.s32.totalorder %s22, 0
      %p195 = por %p193, %p194
      %p196 = scmp.le.s32.totalorder 1, %s16
      %p197 = scmp.lt.s32.totalorder %s16, 3
      %p198 = pnand %p196, %p197
      %p199 = pneg %p198
      // Predicated region
      $region9: #{tpu_custom_call.1} parent=5 // pred_check
        _
      $region10: #{tpu_custom_call.1} parent=5 // pred_check_branch
        %201 = sbr.rel (%p198) target = $region12
      $region11: #{tpu_custom_call.1} parent=5 // pred_region
        %s202 = ssub.s32 %s16, 1
        // Predicated region
        $region13: #{tpu_custom_call.1} parent=11 // pred_check
          %p203 = pneg %p89
        $region14: #{tpu_custom_call.1} parent=11 // pred_check_branch
          %205 = sbr.rel (%p203) target = $region16
        $region15: #{tpu_custom_call.1} parent=11 // pred_region
          %s207 = ssub.s32 2048, 2048
          %208 = vsyncadd [#allocation3], %s207
          %s209 = sshll.u32 [#allocation2], 4
          %s210 = int_to_ptr.vmem [resolvable:$true] %s209
          %215 = dma.hbm_to_vmem [thread:$0]  %s2, 2048, %s210, [#allocation3], 128, 128, 8
        $region16: #{tpu_custom_call.1} parent=11 // pred_fallthru
          _
        // Predicated region
        $region17: #{tpu_custom_call.1} parent=11 // pred_check
          %p216 = pneg %p136
        $region18: #{tpu_custom_call.1} parent=11 // pred_check_branch
          %218 = sbr.rel (%p216) target = $region20
        $region19: #{tpu_custom_call.1} parent=11 // pred_region
          _
        $region20: #{tpu_custom_call.1} parent=11 // pred_fallthru
          _
      $region12: #{tpu_custom_call.1} parent=5 // pred_fallthru
        _
      %p219 = scmp.lt.s32.totalorder %s16, 2
      // Predicated region
      $region21: #{tpu_custom_call.1} parent=5 // pred_check
        %p220 = pneg %p219
      $region22: #{tpu_custom_call.1} parent=5 // pred_check_branch
        %222 = sbr.rel (%p220) target = $region24
      $region23: #{tpu_custom_call.1} parent=5 // pred_region
        // Predicated region
        $region25: #{tpu_custom_call.1} parent=23 // pred_check
          %p223 = pneg %p36
        $region26: #{tpu_custom_call.1} parent=23 // pred_check_branch
          %225 = sbr.rel (%p223) target = $region28
        $region27: #{tpu_custom_call.1} parent=23 // pred_region
          %s226 = smul.u32 8, %s16
          %p227 = scmp.lt.s32.totalorder %s226, 15
          %s228 = scalar_select %p227, %s226, 15
          %s229 = smul.addr %s228, 8
          %s230 = scalar_lea.vmem %s0, %s229
          %s231 = smul.u32 8, %s16
        $region28: #{tpu_custom_call.1} parent=23 // pred_fallthru
          _
        // Predicated region
        $region29: #{tpu_custom_call.1} parent=23 // pred_check
          %p232 = pneg %p62
        $region30: #{tpu_custom_call.1} parent=23 // pred_check_branch
          %234 = sbr.rel (%p232) target = $region32
        $region31: #{tpu_custom_call.1} parent=23 // pred_region
          %s235 = smul.u32 8, %s16
          %p236 = scmp.lt.s32.totalorder %s235, 15
          %s237 = scalar_select %p236, %s235, 15
          %s238 = smul.addr %s237, 8
          %s239 = scalar_lea.vmem %s1, %s238
          %s240 = smul.u32 8, %s16
        $region32: #{tpu_custom_call.1} parent=23 // pred_fallthru
          _
        // Predicated region
        $region33: #{tpu_custom_call.1} parent=23 // pred_check
          %p241 = pneg %p109
        $region34: #{tpu_custom_call.1} parent=23 // pred_check_branch
          %243 = sbr.rel (%p241) target = $region36
        $region35: #{tpu_custom_call.1} parent=23 // pred_region
          %s244 = smul.u32 8, %s16
          %p245 = scmp.lt.s32.totalorder %s244, 15
          %s246 = scalar_select %p245, %s244, 15
          %s247 = smul.addr %s246, 8
          %s248 = scalar_lea.vmem %s3, %s247
          %s249 = smul.u32 8, %s16
        $region36: #{tpu_custom_call.1} parent=23 // pred_fallthru
          _
        // Predicated region
        $region37: #{tpu_custom_call.1} parent=23 // pred_check
          %p250 = pneg %p156
        $region38: #{tpu_custom_call.1} parent=23 // pred_check_branch
          %252 = sbr.rel (%p250) target = $region40
        $region39: #{tpu_custom_call.1} parent=23 // pred_region
          %s253 = smul.u32 8, %s16
          %p254 = scmp.lt.s32.totalorder %s253, 15
          %s255 = scalar_select %p254, %s253, 15
          %s256 = smul.addr %s255, 8
          %s257 = scalar_lea.vmem %s5, %s256
          %s258 = smul.u32 8, %s16
        $region40: #{tpu_custom_call.1} parent=23 // pred_fallthru
          _
      $region24: #{tpu_custom_call.1} parent=5 // pred_fallthru
        _
      %p259 = scmp.le.s32.totalorder 1, %s16
      %p260 = scmp.lt.s32.totalorder %s16, 3
      %p261 = pnand %p259, %p260
      %p262 = pneg %p261
      // Predicated region
      $region41: #{tpu_custom_call.1} parent=5 // pred_check
        _
      $region42: #{tpu_custom_call.1} parent=5 // pred_check_branch
        %264 = sbr.rel (%p261) target = $region44
      $region43: #{tpu_custom_call.1} parent=5 // pred_region
        %s265 = ssub.s32 %s16, 1
        // Predicated region
        $region45: #{tpu_custom_call.1} parent=43 // pred_check
          %p266 = pneg %p89
        $region46: #{tpu_custom_call.1} parent=43 // pred_check_branch
          %268 = sbr.rel (%p266) target = $region48
        $region47: #{tpu_custom_call.1} parent=43 // pred_region
          %269 = dma.done [#allocation3], 2048
        $region48: #{tpu_custom_call.1} parent=43 // pred_fallthru
          _
        %s270 = smul.u32 8, %s21
        %p271 = scmp.lt.s32.totalorder %s270, 15
        %s272 = scalar_select %p271, %s270, 15
        %s273 = smul.addr %s272, 8
        %s274 = scalar_lea.vmem %s0, %s273
        %p275 = pneg %p42
        %p276 = pneg %p39
        %s277 = smul.u32 8, %s21
        %p278 = scmp.lt.s32.totalorder %s277, 15
        %s279 = scalar_select %p278, %s277, 15
        %s280 = smul.addr %s279, 8
        %s281 = scalar_lea.vmem %s1, %s280
        %p282 = pneg %p68
        %p283 = pneg %p65
        %p284 = pneg %p89
        %p285 = pneg %p86
        %s286 = smul.u32 8, %s21
        %p287 = scmp.lt.s32.totalorder %s286, 15
        %s288 = scalar_select %p287, %s286, 15
        %s289 = smul.addr %s288, 8
        %s290 = scalar_lea.vmem %s3, %s289
        %p291 = pneg %p115
        %p292 = pneg %p112
        %p293 = pneg %p136
        %p294 = pneg %p133
        %s295 = smul.u32 8, %s21
        %p296 = scmp.lt.s32.totalorder %s295, 15
        %s297 = scalar_select %p296, %s295, 15
        %s298 = smul.addr %s297, 8
        %s299 = scalar_lea.vmem %s5, %s298
        %p300 = pneg %p162
        %p301 = pneg %p159
        %p302 = pneg %p188
        %p303 = pneg %p185
        %s304 = sand.u32 %s175, 1
        %s305 = scalar_lea.sflag [#allocation4], %s304
        %s306 = sand.u32 %s175, 1
        %s307 = smul.addr %s306, 8
        %s308 = scalar_lea.vmem [#allocation5], %s307
        %s309 = smul.u32 8, %s21
        %p310 = scmp.lt.s32.totalorder %s309, 15
        %s311 = scalar_select %p310, %s309, 15
        %s312 = smul.addr %s311, 8
        %s313 = scalar_lea.vmem %s0, %s312
        %s314 = smul.u32 8, %s21
        %s315 = smul.u32 8, %s21
        %p316 = scmp.lt.s32.totalorder %s315, 15
        %s317 = scalar_select %p316, %s315, 15
        %s318 = smul.addr %s317, 8
        %s319 = scalar_lea.vmem %s1, %s318
        %s320 = smul.u32 8, %s21
        %s321 = smul.u32 8, %s21
        %p322 = scmp.lt.s32.totalorder %s321, 15
        %s323 = scalar_select %p322, %s321, 15
        %s324 = smul.addr %s323, 8
        %s325 = scalar_lea.vmem %s3, %s324
        %s326 = smul.u32 8, %s21
        %s327 = smul.u32 8, %s21
        %p328 = scmp.lt.s32.totalorder %s327, 15
        %s329 = scalar_select %p328, %s327, 15
        %s330 = smul.addr %s329, 8
        %s331 = scalar_lea.vmem %s5, %s330
        %s332 = smul.u32 8, %s21
        %v333 = vld [vmem:[%s313] sm:$0xff]
        %v334 = vld [vmem:[%s313 + $0x8] sm:$0xff]
        %v335 = vld [vmem:[%s313 + $0x10] sm:$0xff]
        %v336 = vld [vmem:[%s313 + $0x18] sm:$0xff]
        %v337 = vld [vmem:[%s313 + $0x20] sm:$0xff]
        %v338 = vld [vmem:[%s313 + $0x28] sm:$0xff]
        %v339 = vld [vmem:[%s313 + $0x30] sm:$0xff]
        %v340 = vld [vmem:[%s313 + $0x38] sm:$0xff]
        %v341 = vmul.f32 %v333, %v333
        %v342 = vmul.f32 %v334, %v334
        %v343 = vmul.f32 %v335, %v335
        %v344 = vmul.f32 %v336, %v336
        %v345 = vmul.f32 %v337, %v337
        %v346 = vmul.f32 %v338, %v338
        %v347 = vmul.f32 %v339, %v339
        %v348 = vmul.f32 %v340, %v340
        %349 = vadd.xlane.f32.xlu0 %v341
        %v350 = vpop.xlane.xlu0 %349
        %351 = vadd.xlane.f32.xlu0 %v342
        %v352 = vpop.xlane.xlu0 %351
        %353 = vadd.xlane.f32.xlu0 %v343
        %v354 = vpop.xlane.xlu0 %353
        %355 = vadd.xlane.f32.xlu0 %v344
        %v356 = vpop.xlane.xlu0 %355
        %357 = vadd.xlane.f32.xlu0 %v345
        %v358 = vpop.xlane.xlu0 %357
        %359 = vadd.xlane.f32.xlu0 %v346
        %v360 = vpop.xlane.xlu0 %359
        %361 = vadd.xlane.f32.xlu0 %v347
        %v362 = vpop.xlane.xlu0 %361
        %363 = vadd.xlane.f32.xlu0 %v348
        %v364 = vpop.xlane.xlu0 %363
        %v365 = vrsqrt.pop %v350
        %v366 = vmul.f32 %v350, %v365
        %vm367 = vcmp.eq.f32.partialorder %v350, inf
        %v368 = vsel %vm367, %v350, %v366
        %vm369 = vcmp.eq.f32.partialorder %v350, 0.0
        %v370 = vand.u32 %v350, 2147483648
        %v371 = vsel %vm369, %v370, %v368
        %v372 = vrsqrt.pop %v352
        %v373 = vmul.f32 %v352, %v372
        %vm374 = vcmp.eq.f32.partialorder %v352, inf
        %v375 = vsel %vm374, %v352, %v373
        %vm376 = vcmp.eq.f32.partialorder %v352, 0.0
        %v377 = vand.u32 %v352, 2147483648
        %v378 = vsel %vm376, %v377, %v375
        %v379 = vrsqrt.pop %v354
        %v380 = vmul.f32 %v354, %v379
        %vm381 = vcmp.eq.f32.partialorder %v354, inf
        %v382 = vsel %vm381, %v354, %v380
        %vm383 = vcmp.eq.f32.partialorder %v354, 0.0
        %v384 = vand.u32 %v354, 2147483648
        %v385 = vsel %vm383, %v384, %v382
        %v386 = vrsqrt.pop %v356
        %v387 = vmul.f32 %v356, %v386
        %vm388 = vcmp.eq.f32.partialorder %v356, inf
        %v389 = vsel %vm388, %v356, %v387
        %vm390 = vcmp.eq.f32.partialorder %v356, 0.0
        %v391 = vand.u32 %v356, 2147483648
        %v392 = vsel %vm390, %v391, %v389
        %v393 = vrsqrt.pop %v358
        %v394 = vmul.f32 %v358, %v393
        %vm395 = vcmp.eq.f32.partialorder %v358, inf
        %v396 = vsel %vm395, %v358, %v394
        %vm397 = vcmp.eq.f32.partialorder %v358, 0.0
        %v398 = vand.u32 %v358, 2147483648
        %v399 = vsel %vm397, %v398, %v396
        %v400 = vrsqrt.pop %v360
        %v401 = vmul.f32 %v360, %v400
        %vm402 = vcmp.eq.f32.partialorder %v360, inf
        %v403 = vsel %vm402, %v360, %v401
        %vm404 = vcmp.eq.f32.partialorder %v360, 0.0
        %v405 = vand.u32 %v360, 2147483648
        %v406 = vsel %vm404, %v405, %v403
        %v407 = vrsqrt.pop %v362
        %v408 = vmul.f32 %v362, %v407
        %vm409 = vcmp.eq.f32.partialorder %v362, inf
        %v410 = vsel %vm409, %v362, %v408
        %vm411 = vcmp.eq.f32.partialorder %v362, 0.0
        %v412 = vand.u32 %v362, 2147483648
        %v413 = vsel %vm411, %v412, %v410
        %v414 = vrsqrt.pop %v364
        %v415 = vmul.f32 %v364, %v414
        %vm416 = vcmp.eq.f32.partialorder %v364, inf
        %v417 = vsel %vm416, %v364, %v415
        %vm418 = vcmp.eq.f32.partialorder %v364, 0.0
        %v419 = vand.u32 %v364, 2147483648
        %v420 = vsel %vm418, %v419, %v417
        %v421 = vmax.f32 %v371, 1e-12
        %v422 = vmax.f32 %v378, 1e-12
        %v423 = vmax.f32 %v385, 1e-12
        %v424 = vmax.f32 %v392, 1e-12
        %v425 = vmax.f32 %v399, 1e-12
        %v426 = vmax.f32 %v406, 1e-12
        %v427 = vmax.f32 %v413, 1e-12
        %v428 = vmax.f32 %v420, 1e-12
        %v429 = vrcp.pop %v421
        %v430 = vmul.f32 %v333, %v429
        %v431 = vrcp.pop %v422
        %v432 = vmul.f32 %v334, %v431
        %v433 = vrcp.pop %v423
        %v434 = vmul.f32 %v335, %v433
        %v435 = vrcp.pop %v424
        %v436 = vmul.f32 %v336, %v435
        %v437 = vrcp.pop %v425
        %v438 = vmul.f32 %v337, %v437
        %v439 = vrcp.pop %v426
        %v440 = vmul.f32 %v338, %v439
        %v441 = vrcp.pop %v427
        %v442 = vmul.f32 %v339, %v441
        %v443 = vrcp.pop %v428
        %v444 = vmul.f32 %v340, %v443
        %v445 = vld [vmem:[%s319] sm:$0xff]
        %v446 = vld [vmem:[%s319 + $0x8] sm:$0xff]
        %v447 = vld [vmem:[%s319 + $0x10] sm:$0xff]
        %v448 = vld [vmem:[%s319 + $0x18] sm:$0xff]
        %v449 = vld [vmem:[%s319 + $0x20] sm:$0xff]
        %v450 = vld [vmem:[%s319 + $0x28] sm:$0xff]
        %v451 = vld [vmem:[%s319 + $0x30] sm:$0xff]
        %v452 = vld [vmem:[%s319 + $0x38] sm:$0xff]
        %v453 = vld [vmem:[#allocation2] sm:$0xff]
        %v454 = vld [vmem:[#allocation2 + $0x8] sm:$0xff]
        %v455 = vld [vmem:[#allocation2 + $0x10] sm:$0xff]
        %v456 = vld [vmem:[#allocation2 + $0x18] sm:$0xff]
        %v457 = vld [vmem:[#allocation2 + $0x20] sm:$0xff]
        %v458 = vld [vmem:[#allocation2 + $0x28] sm:$0xff]
        %v459 = vld [vmem:[#allocation2 + $0x30] sm:$0xff]
        %v460 = vld [vmem:[#allocation2 + $0x38] sm:$0xff]
        %v461 = vld [vmem:[#allocation2 + $0x40] sm:$0xff]
        %v462 = vld [vmem:[#allocation2 + $0x48] sm:$0xff]
        %v463 = vld [vmem:[#allocation2 + $0x50] sm:$0xff]
        %v464 = vld [vmem:[#allocation2 + $0x58] sm:$0xff]
        %v465 = vld [vmem:[#allocation2 + $0x60] sm:$0xff]
        %v466 = vld [vmem:[#allocation2 + $0x68] sm:$0xff]
        %v467 = vld [vmem:[#allocation2 + $0x70] sm:$0xff]
        %v468 = vld [vmem:[#allocation2 + $0x78] sm:$0xff]
        %469 = vmatprep.subr.mxu0 0.0
        %470 = vmatpush1.msra.mxu0 %v453
        %471 = vmatprep.subr.mxu0 0.0
        %472 = vmatpush1.msra.mxu0 %v454
        %473 = vmatprep.subr.mxu0 0.0
        %474 = vmatpush1.msra.mxu0 %v455
        %475 = vmatprep.subr.mxu0 0.0
        %476 = vmatpush1.msra.mxu0 %v456
        %477 = vmatprep.subr.mxu0 0.0
        %478 = vmatpush1.msra.mxu0 %v457
        %479 = vmatprep.subr.mxu0 0.0
        %480 = vmatpush1.msra.mxu0 %v458
        %481 = vmatprep.subr.mxu0 0.0
        %482 = vmatpush1.msra.mxu0 %v459
        %483 = vmatprep.subr.mxu0 0.0
        %484 = vmatpush1.msra.mxu0 %v460
        %485 = vmatprep.subr.mxu0 0.0
        %486 = vmatpush1.msra.mxu0 %v461
        %487 = vmatprep.subr.mxu0 0.0
        %488 = vmatpush1.msra.mxu0 %v462
        %489 = vmatprep.subr.mxu0 0.0
        %490 = vmatpush1.msra.mxu0 %v463
        %491 = vmatprep.subr.mxu0 0.0
        %492 = vmatpush1.msra.mxu0 %v464
        %493 = vmatprep.subr.mxu0 0.0
        %494 = vmatpush1.msra.mxu0 %v465
        %495 = vmatprep.subr.mxu0 0.0
        %496 = vmatpush1.msra.mxu0 %v466
        %497 = vmatprep.subr.mxu0 0.0
        %498 = vmatpush1.msra.mxu0 %v467
        %499 = vmatprep.subr.mxu0 0.0
        %500 = vmatpush1.msra.mxu0 %v468
        %501 = vmatprep.subr.mxu0 0.0
        %502 = vmatpush1.msra.mxu0 0.0
        %503 = vmatprep.subr.mxu0 0.0
        %504 = vmatpush1.msra.mxu0 0.0
        %505 = vmatprep.subr.mxu0 0.0
        %506 = vmatpush1.msra.mxu0 0.0
        %507 = vmatprep.subr.mxu0 0.0
        %508 = vmatpush1.msra.mxu0 0.0
        %509 = vmatprep.subr.mxu0 0.0
        %510 = vmatpush1.msra.mxu0 0.0
        %511 = vmatprep.subr.mxu0 0.0
        %512 = vmatpush1.msra.mxu0 0.0
        %513 = vmatprep.subr.mxu0 0.0
        %514 = vmatpush1.msra.mxu0 0.0
        %515 = vmatprep.subr.mxu0 0.0
        %516 = vmatpush1.msra.mxu0 0.0
        %517 = vmatprep.subr.mxu0 0.0
        %518 = vmatpush1.msra.mxu0 0.0
        %519 = vmatprep.subr.mxu0 0.0
        %520 = vmatpush1.msra.mxu0 0.0
        %521 = vmatprep.subr.mxu0 0.0
        %522 = vmatpush1.msra.mxu0 0.0
        %523 = vmatprep.subr.mxu0 0.0
        %524 = vmatpush1.msra.mxu0 0.0
        %525 = vmatprep.subr.mxu0 0.0
        %526 = vmatpush1.msra.mxu0 0.0
        %527 = vmatprep.subr.mxu0 0.0
        %528 = vmatpush1.msra.mxu0 0.0
        %529 = vmatprep.subr.mxu0 0.0
        %530 = vmatpush1.msra.mxu0 0.0
        %531 = vmatprep.subr.mxu0 0.0
        %532 = vmatpush1.msra.mxu0 0.0
        %533 = vmatprep.mubr.f32.mxu0 0.0
        %534 = vmatmul.mubr.f32.gmra.mrb[0].mxu0 %v430
        %v535 = vpop.f32.mrb[0].mxu0
        %v536 = vadd.f32 0.0, %v535
        %v537 = vpop.f32.mrb[0].mxu0
        %538 = vmatprep.mubr.f32.mxu0 0.0
        %539 = vmatmul.mubr.f32.gmra.mrb[0].mxu0 %v432
        %v540 = vpop.f32.mrb[0].mxu0
        %v541 = vadd.f32 0.0, %v540
        %v542 = vpop.f32.mrb[0].mxu0
        %543 = vmatprep.mubr.f32.mxu0 0.0
        %544 = vmatmul.mubr.f32.gmra.mrb[0].mxu0 %v434
        %v545 = vpop.f32.mrb[0].mxu0
        %v546 = vadd.f32 0.0, %v545
        %v547 = vpop.f32.mrb[0].mxu0
        %548 = vmatprep.mubr.f32.mxu0 0.0
        %549 = vmatmul.mubr.f32.gmra.mrb[0].mxu0 %v436
        %v550 = vpop.f32.mrb[0].mxu0
        %v551 = vadd.f32 0.0, %v550
        %v552 = vpop.f32.mrb[0].mxu0
        %553 = vmatprep.mubr.f32.mxu0 0.0
        %554 = vmatmul.mubr.f32.gmra.mrb[0].mxu0 %v438
        %v555 = vpop.f32.mrb[0].mxu0
        %v556 = vadd.f32 0.0, %v555
        %v557 = vpop.f32.mrb[0].mxu0
        %558 = vmatprep.mubr.f32.mxu0 0.0
        %559 = vmatmul.mubr.f32.gmra.mrb[0].mxu0 %v440
        %v560 = vpop.f32.mrb[0].mxu0
        %v561 = vadd.f32 0.0, %v560
        %v562 = vpop.f32.mrb[0].mxu0
        %563 = vmatprep.mubr.f32.mxu0 0.0
        %564 = vmatmul.mubr.f32.gmra.mrb[0].mxu0 %v442
        %v565 = vpop.f32.mrb[0].mxu0
        %v566 = vadd.f32 0.0, %v565
        %v567 = vpop.f32.mrb[0].mxu0
        %568 = vmatprep.mubr.f32.mxu0 0.0
        %569 = vmatmul.mubr.f32.gmra.mrb[0].mxu0 %v444
        %v570 = vpop.f32.mrb[0].mxu0
        %v571 = vadd.f32 0.0, %v570
        %v572 = vpop.f32.mrb[0].mxu0
        %573 = vmatprep.mubr.f32.mxu0 0.0
        %574 = vmatmul.mubr.f32.gmra.mrb[0].mxu0 %v445
        %v575 = vpop.f32.mrb[0].mxu0
        %v576 = vadd.f32 0.0, %v575
        %v577 = vpop.f32.mrb[0].mxu0
        %578 = vmatprep.mubr.f32.mxu0 0.0
        %579 = vmatmul.mubr.f32.gmra.mrb[0].mxu0 %v446
        %v580 = vpop.f32.mrb[0].mxu0
        %v581 = vadd.f32 0.0, %v580
        %v582 = vpop.f32.mrb[0].mxu0
        %583 = vmatprep.mubr.f32.mxu0 0.0
        %584 = vmatmul.mubr.f32.gmra.mrb[0].mxu0 %v447
        %v585 = vpop.f32.mrb[0].mxu0
        %v586 = vadd.f32 0.0, %v585
        %v587 = vpop.f32.mrb[0].mxu0
        %588 = vmatprep.mubr.f32.mxu0 0.0
        %589 = vmatmul.mubr.f32.gmra.mrb[0].mxu0 %v448
        %v590 = vpop.f32.mrb[0].mxu0
        %v591 = vadd.f32 0.0, %v590
        %v592 = vpop.f32.mrb[0].mxu0
        %593 = vmatprep.mubr.f32.mxu0 0.0
        %594 = vmatmul.mubr.f32.gmra.mrb[0].mxu0 %v449
        %v595 = vpop.f32.mrb[0].mxu0
        %v596 = vadd.f32 0.0, %v595
        %v597 = vpop.f32.mrb[0].mxu0
        %598 = vmatprep.mubr.f32.mxu0 0.0
        %599 = vmatmul.mubr.f32.gmra.mrb[0].mxu0 %v450
        %v600 = vpop.f32.mrb[0].mxu0
        %v601 = vadd.f32 0.0, %v600
        %v602 = vpop.f32.mrb[0].mxu0
        %603 = vmatprep.mubr.f32.mxu0 0.0
        %604 = vmatmul.mubr.f32.gmra.mrb[0].mxu0 %v451
        %v605 = vpop.f32.mrb[0].mxu0
        %v606 = vadd.f32 0.0, %v605
        %v607 = vpop.f32.mrb[0].mxu0
        %608 = vmatprep.mubr.f32.mxu0 0.0
        %609 = vmatmul.mubr.f32.gmra.mrb[0].mxu0 %v452
        %v610 = vpop.f32.mrb[0].mxu0
        %v611 = vadd.f32 0.0, %v610
        %v612 = vpop.f32.mrb[0].mxu0
        %613 = vdwg.mxu0
        %v614 = vmul.f32 %v536, 2.0
        %v615 = vmul.f32 %v541, 2.0
        %v616 = vmul.f32 %v546, 2.0
        %v617 = vmul.f32 %v551, 2.0
        %v618 = vmul.f32 %v556, 2.0
        %v619 = vmul.f32 %v561, 2.0
        %v620 = vmul.f32 %v566, 2.0
        %v621 = vmul.f32 %v571, 2.0
        %v622 = vmul.f32 %v576, 2.0
        %v623 = vmul.f32 %v581, 2.0
        %v624 = vmul.f32 %v586, 2.0
        %v625 = vmul.f32 %v591, 2.0
        %v626 = vmul.f32 %v596, 2.0
        %v627 = vmul.f32 %v601, 2.0
        %v628 = vmul.f32 %v606, 2.0
        %v629 = vmul.f32 %v611, 2.0
        %v630 = vlaneseq
        %v631 = vand.u32 %v630, 127
        %v632 = vlaneseq
        %v633 = vshrl.u32 %v632, 7
        %v634 = vadd.s32 %v633, 8
        %v635 = vadd.s32 %v633, 16
        %v636 = vadd.s32 %v633, 24
        %v637 = vadd.s32 %v633, 32
        %v638 = vadd.s32 %v633, 40
        %v639 = vadd.s32 %v633, 48
        %v640 = vadd.s32 %v633, 56
        %s641 = smul.u32 %s21, 64
        %v642 = vstv %s641
        %v643 = vadd.s32 %v633, %v642
        %v644 = vadd.s32 %v634, %v642
        %v645 = vadd.s32 %v635, %v642
        %v646 = vadd.s32 %v636, %v642
        %v647 = vadd.s32 %v637, %v642
        %v648 = vadd.s32 %v638, %v642
        %v649 = vadd.s32 %v639, %v642
        %v650 = vadd.s32 %v640, %v642
        %vm651 = vcmp.lt.s32.totalorder %v631, 96
        %v652 = vsel %vm651, %v614, -1e+30
        %v653 = vsel %vm651, %v615, -1e+30
        %v654 = vsel %vm651, %v616, -1e+30
        %v655 = vsel %vm651, %v617, -1e+30
        %v656 = vsel %vm651, %v618, -1e+30
        %v657 = vsel %vm651, %v619, -1e+30
        %v658 = vsel %vm651, %v620, -1e+30
        %v659 = vsel %vm651, %v621, -1e+30
        %660 = vmax.xlane.f32.xlu0 %v652
        %v661 = vpop.xlane.xlu0 %660
        %662 = vmax.xlane.f32.xlu0 %v653
        %v663 = vpop.xlane.xlu0 %662
        %664 = vmax.xlane.f32.xlu0 %v654
        %v665 = vpop.xlane.xlu0 %664
        %666 = vmax.xlane.f32.xlu0 %v655
        %v667 = vpop.xlane.xlu0 %666
        %668 = vmax.xlane.f32.xlu0 %v656
        %v669 = vpop.xlane.xlu0 %668
        %670 = vmax.xlane.f32.xlu0 %v657
        %v671 = vpop.xlane.xlu0 %670
        %672 = vmax.xlane.f32.xlu0 %v658
        %v673 = vpop.xlane.xlu0 %672
        %674 = vmax.xlane.f32.xlu0 %v659
        %v675 = vpop.xlane.xlu0 %674
        %676 = vmax.xlane.f32.xlu0 %v622
        %v677 = vpop.xlane.xlu0 %676
        %678 = vmax.xlane.f32.xlu0 %v623
        %v679 = vpop.xlane.xlu0 %678
        %680 = vmax.xlane.f32.xlu0 %v624
        %v681 = vpop.xlane.xlu0 %680
        %682 = vmax.xlane.f32.xlu0 %v625
        %v683 = vpop.xlane.xlu0 %682
        %684 = vmax.xlane.f32.xlu0 %v626
        %v685 = vpop.xlane.xlu0 %684
        %686 = vmax.xlane.f32.xlu0 %v627
        %v687 = vpop.xlane.xlu0 %686
        %688 = vmax.xlane.f32.xlu0 %v628
        %v689 = vpop.xlane.xlu0 %688
        %690 = vmax.xlane.f32.xlu0 %v629
        %v691 = vpop.xlane.xlu0 %690
        %v692 = vsub.f32 %v622, %v677
        %v693 = vsub.f32 %v623, %v679
        %v694 = vsub.f32 %v624, %v681
        %v695 = vsub.f32 %v625, %v683
        %v696 = vsub.f32 %v626, %v685
        %v697 = vsub.f32 %v627, %v687
        %v698 = vsub.f32 %v628, %v689
        %v699 = vsub.f32 %v629, %v691
        %v700 = vmul.f32 %v692, 1.442695
        %v701 = vpow.pop %v700
        %v702 = vmul.f32 %v693, 1.442695
        %v703 = vpow.pop %v702
        %v704 = vmul.f32 %v694, 1.442695
        %v705 = vpow.pop %v704
        %v706 = vmul.f32 %v695, 1.442695
        %v707 = vpow.pop %v706
        %v708 = vmul.f32 %v696, 1.442695
        %v709 = vpow.pop %v708
        %v710 = vmul.f32 %v697, 1.442695
        %v711 = vpow.pop %v710
        %v712 = vmul.f32 %v698, 1.442695
        %v713 = vpow.pop %v712
        %v714 = vmul.f32 %v699, 1.442695
        %v715 = vpow.pop %v714
        %vm716 = vcmp.ne.s32.totalorder %v631, %v643
        %vm717 = vcmp.ne.s32.totalorder %v631, %v644
        %vm718 = vcmp.ne.s32.totalorder %v631, %v645
        %vm719 = vcmp.ne.s32.totalorder %v631, %v646
        %vm720 = vcmp.ne.s32.totalorder %v631, %v647
        %vm721 = vcmp.ne.s32.totalorder %v631, %v648
        %vm722 = vcmp.ne.s32.totalorder %v631, %v649
        %vm723 = vcmp.ne.s32.totalorder %v631, %v650
        %vm724 = vmand %vm716, %vm651
        %vm725 = vmand %vm717, %vm651
        %vm726 = vmand %vm718, %vm651
        %vm727 = vmand %vm719, %vm651
        %vm728 = vmand %vm720, %vm651
        %vm729 = vmand %vm721, %vm651
        %vm730 = vmand %vm722, %vm651
        %vm731 = vmand %vm723, %vm651
        %v732 = vsel %vm724, %v701, 0.0
        %v733 = vsel %vm725, %v703, 0.0
        %v734 = vsel %vm726, %v705, 0.0
        %v735 = vsel %vm727, %v707, 0.0
        %v736 = vsel %vm728, %v709, 0.0
        %v737 = vsel %vm729, %v711, 0.0
        %v738 = vsel %vm730, %v713, 0.0
        %v739 = vsel %vm731, %v715, 0.0
        %740 = vadd.xlane.f32.xlu0 %v732
        %v741 = vpop.xlane.xlu0 %740
        %742 = vadd.xlane.f32.xlu0 %v733
        %v743 = vpop.xlane.xlu0 %742
        %744 = vadd.xlane.f32.xlu0 %v734
        %v745 = vpop.xlane.xlu0 %744
        %746 = vadd.xlane.f32.xlu0 %v735
        %v747 = vpop.xlane.xlu0 %746
        %748 = vadd.xlane.f32.xlu0 %v736
        %v749 = vpop.xlane.xlu0 %748
        %750 = vadd.xlane.f32.xlu0 %v737
        %v751 = vpop.xlane.xlu0 %750
        %752 = vadd.xlane.f32.xlu0 %v738
        %v753 = vpop.xlane.xlu0 %752
        %754 = vadd.xlane.f32.xlu0 %v739
        %v755 = vpop.xlane.xlu0 %754
        %v756 = vlog2.pop %v741
        %v757 = vmul.f32 %v756, 0.6931472
        %v758 = vlog2.pop %v743
        %v759 = vmul.f32 %v758, 0.6931472
        %v760 = vlog2.pop %v745
        %v761 = vmul.f32 %v760, 0.6931472
        %v762 = vlog2.pop %v747
        %v763 = vmul.f32 %v762, 0.6931472
        %v764 = vlog2.pop %v749
        %v765 = vmul.f32 %v764, 0.6931472
        %v766 = vlog2.pop %v751
        %v767 = vmul.f32 %v766, 0.6931472
        %v768 = vlog2.pop %v753
        %v769 = vmul.f32 %v768, 0.6931472
        %v770 = vlog2.pop %v755
        %v771 = vmul.f32 %v770, 0.6931472
        %v772 = vld [vmem:[%s325] sm:$0xff]
        %v773 = vld [vmem:[%s325 + $0x8] sm:$0xff]
        %v774 = vld [vmem:[%s325 + $0x10] sm:$0xff]
        %v775 = vld [vmem:[%s325 + $0x18] sm:$0xff]
        %v776 = vld [vmem:[%s325 + $0x20] sm:$0xff]
        %v777 = vld [vmem:[%s325 + $0x28] sm:$0xff]
        %v778 = vld [vmem:[%s325 + $0x30] sm:$0xff]
        %v779 = vld [vmem:[%s325 + $0x38] sm:$0xff]
        %v780 = vld [vmem:[%s4] sm:$0x1]
        %781 = vset.pattern.permute.xlu0 0
        %782 = vperm.xlu0 %781, %v772
        %v783 = vpop.permute.xlu0 %782
        %784 = vset.pattern.permute.xlu0 0
        %785 = vperm.xlu0 %784, %v773
        %v786 = vpop.permute.xlu0 %785
        %787 = vset.pattern.permute.xlu0 0
        %788 = vperm.xlu0 %787, %v774
        %v789 = vpop.permute.xlu0 %788
        %790 = vset.pattern.permute.xlu0 0
        %791 = vperm.xlu0 %790, %v775
        %v792 = vpop.permute.xlu0 %791
        %793 = vset.pattern.permute.xlu0 0
        %794 = vperm.xlu0 %793, %v776
        %v795 = vpop.permute.xlu0 %794
        %796 = vset.pattern.permute.xlu0 0
        %797 = vperm.xlu0 %796, %v777
        %v798 = vpop.permute.xlu0 %797
        %799 = vset.pattern.permute.xlu0 0
        %800 = vperm.xlu0 %799, %v778
        %v801 = vpop.permute.xlu0 %800
        %802 = vset.pattern.permute.xlu0 0
        %803 = vperm.xlu0 %802, %v779
        %v804 = vpop.permute.xlu0 %803
        %v805 = vlaneseq
        %v806 = vshrl.u32 %v805, 7
        %v807 = vsub.s32 0, %v806
        %v808 = vrot.slane %v780, %v807
        %vm809 = vcmp.eq.s32.totalorder %v783, %v808
        %vm810 = vcmp.eq.s32.totalorder %v786, %v808
        %vm811 = vcmp.eq.s32.totalorder %v789, %v808
        %vm812 = vcmp.eq.s32.totalorder %v792, %v808
        %vm813 = vcmp.eq.s32.totalorder %v795, %v808
        %vm814 = vcmp.eq.s32.totalorder %v798, %v808
        %vm815 = vcmp.eq.s32.totalorder %v801, %v808
        %vm816 = vcmp.eq.s32.totalorder %v804, %v808
        %v817 = vsel %vm809, 1, 0
        %v818 = vsel %vm810, 1, 0
        %v819 = vsel %vm811, 1, 0
        %v820 = vsel %vm812, 1, 0
        %v821 = vsel %vm813, 1, 0
        %v822 = vsel %vm814, 1, 0
        %v823 = vsel %vm815, 1, 0
        %v824 = vsel %vm816, 1, 0
        %v825 = vcvt.s32.f32 %v817
        %v826 = vcvt.s32.f32 %v818
        %v827 = vcvt.s32.f32 %v819
        %v828 = vcvt.s32.f32 %v820
        %v829 = vcvt.s32.f32 %v821
        %v830 = vcvt.s32.f32 %v822
        %v831 = vcvt.s32.f32 %v823
        %v832 = vcvt.s32.f32 %v824
        %833 = vadd.xlane.f32.xlu0 %v825
        %v834 = vpop.xlane.xlu0 %833
        %835 = vadd.xlane.f32.xlu0 %v826
        %v836 = vpop.xlane.xlu0 %835
        %837 = vadd.xlane.f32.xlu0 %v827
        %v838 = vpop.xlane.xlu0 %837
        %839 = vadd.xlane.f32.xlu0 %v828
        %v840 = vpop.xlane.xlu0 %839
        %841 = vadd.xlane.f32.xlu0 %v829
        %v842 = vpop.xlane.xlu0 %841
        %843 = vadd.xlane.f32.xlu0 %v830
        %v844 = vpop.xlane.xlu0 %843
        %845 = vadd.xlane.f32.xlu0 %v831
        %v846 = vpop.xlane.xlu0 %845
        %847 = vadd.xlane.f32.xlu0 %v832
        %v848 = vpop.xlane.xlu0 %847
        %v849 = vmul.f32 %v614, %v825
        %v850 = vmul.f32 %v615, %v826
        %v851 = vmul.f32 %v616, %v827
        %v852 = vmul.f32 %v617, %v828
        %v853 = vmul.f32 %v618, %v829
        %v854 = vmul.f32 %v619, %v830
        %v855 = vmul.f32 %v620, %v831
        %v856 = vmul.f32 %v621, %v832
        %857 = vadd.xlane.f32.xlu0 %v849
        %v858 = vpop.xlane.xlu0 %857
        %859 = vadd.xlane.f32.xlu0 %v850
        %v860 = vpop.xlane.xlu0 %859
        %861 = vadd.xlane.f32.xlu0 %v851
        %v862 = vpop.xlane.xlu0 %861
        %863 = vadd.xlane.f32.xlu0 %v852
        %v864 = vpop.xlane.xlu0 %863
        %865 = vadd.xlane.f32.xlu0 %v853
        %v866 = vpop.xlane.xlu0 %865
        %867 = vadd.xlane.f32.xlu0 %v854
        %v868 = vpop.xlane.xlu0 %867
        %869 = vadd.xlane.f32.xlu0 %v855
        %v870 = vpop.xlane.xlu0 %869
        %871 = vadd.xlane.f32.xlu0 %v856
        %v872 = vpop.xlane.xlu0 %871
        %v873 = vadd.f32 %v661, %v757
        %v874 = vadd.f32 %v663, %v759
        %v875 = vadd.f32 %v665, %v761
        %v876 = vadd.f32 %v667, %v763
        %v877 = vadd.f32 %v669, %v765
        %v878 = vadd.f32 %v671, %v767
        %v879 = vadd.f32 %v673, %v769
        %v880 = vadd.f32 %v675, %v771
        %v881 = vmul.f32 %v834, %v873
        %v882 = vmul.f32 %v836, %v874
        %v883 = vmul.f32 %v838, %v875
        %v884 = vmul.f32 %v840, %v876
        %v885 = vmul.f32 %v842, %v877
        %v886 = vmul.f32 %v844, %v878
        %v887 = vmul.f32 %v846, %v879
        %v888 = vmul.f32 %v848, %v880
        %v889 = vsub.f32 %v858, %v881
        %v890 = vsub.f32 %v860, %v882
        %v891 = vsub.f32 %v862, %v883
        %v892 = vsub.f32 %v864, %v884
        %v893 = vsub.f32 %v866, %v885
        %v894 = vsub.f32 %v868, %v886
        %v895 = vsub.f32 %v870, %v887
        %v896 = vsub.f32 %v872, %v888
        %v897 = vadd.f32 %v889, %v834
        %v898 = vadd.f32 %v890, %v836
        %v899 = vadd.f32 %v891, %v838
        %v900 = vadd.f32 %v892, %v840
        %v901 = vadd.f32 %v893, %v842
        %v902 = vadd.f32 %v894, %v844
        %v903 = vadd.f32 %v895, %v846
        %v904 = vadd.f32 %v896, %v848
        %v905 = vld [vmem:[%s331] sm:$0xff]
        %v906 = vld [vmem:[%s331 + $0x8] sm:$0xff]
        %v907 = vld [vmem:[%s331 + $0x10] sm:$0xff]
        %v908 = vld [vmem:[%s331 + $0x18] sm:$0xff]
        %v909 = vld [vmem:[%s331 + $0x20] sm:$0xff]
        %v910 = vld [vmem:[%s331 + $0x28] sm:$0xff]
        %v911 = vld [vmem:[%s331 + $0x30] sm:$0xff]
        %v912 = vld [vmem:[%s331 + $0x38] sm:$0xff]
        %vm913 = vcmp.gt.f32.partialorder %v834, 0.0
        %vm914 = vcmp.gt.f32.partialorder %v836, 0.0
        %vm915 = vcmp.gt.f32.partialorder %v838, 0.0
        %vm916 = vcmp.gt.f32.partialorder %v840, 0.0
        %vm917 = vcmp.gt.f32.partialorder %v842, 0.0
        %vm918 = vcmp.gt.f32.partialorder %v844, 0.0
        %vm919 = vcmp.gt.f32.partialorder %v846, 0.0
        %vm920 = vcmp.gt.f32.partialorder %v848, 0.0
        %v921 = vsel %vm913, 1, 0
        %v922 = vsel %vm914, 1, 0
        %v923 = vsel %vm915, 1, 0
        %v924 = vsel %vm916, 1, 0
        %v925 = vsel %vm917, 1, 0
        %v926 = vsel %vm918, 1, 0
        %v927 = vsel %vm919, 1, 0
        %v928 = vsel %vm920, 1, 0
        %v929 = vcvt.s32.f32 %v921
        %v930 = vcvt.s32.f32 %v922
        %v931 = vcvt.s32.f32 %v923
        %v932 = vcvt.s32.f32 %v924
        %v933 = vcvt.s32.f32 %v925
        %v934 = vcvt.s32.f32 %v926
        %v935 = vcvt.s32.f32 %v927
        %v936 = vcvt.s32.f32 %v928
        %v937 = vmul.f32 %v905, %v929
        %v938 = vmul.f32 %v906, %v930
        %v939 = vmul.f32 %v907, %v931
        %v940 = vmul.f32 %v908, %v932
        %v941 = vmul.f32 %v909, %v933
        %v942 = vmul.f32 %v910, %v934
        %v943 = vmul.f32 %v911, %v935
        %v944 = vmul.f32 %v912, %v936
        %v945 = vsub.f32 1.0, %v905
        %v946 = vsub.f32 1.0, %v906
        %v947 = vsub.f32 1.0, %v907
        %v948 = vsub.f32 1.0, %v908
        %v949 = vsub.f32 1.0, %v909
        %v950 = vsub.f32 1.0, %v910
        %v951 = vsub.f32 1.0, %v911
        %v952 = vsub.f32 1.0, %v912
        %v953 = vmul.f32 %v945, %v929
        %v954 = vmul.f32 %v946, %v930
        %v955 = vmul.f32 %v947, %v931
        %v956 = vmul.f32 %v948, %v932
        %v957 = vmul.f32 %v949, %v933
        %v958 = vmul.f32 %v950, %v934
        %v959 = vmul.f32 %v951, %v935
        %v960 = vmul.f32 %v952, %v936
        %v961 = vsel %vm913, %v834, 1.0
        %v962 = vsel %vm914, %v836, 1.0
        %v963 = vsel %vm915, %v838, 1.0
        %v964 = vsel %vm916, %v840, 1.0
        %v965 = vsel %vm917, %v842, 1.0
        %v966 = vsel %vm918, %v844, 1.0
        %v967 = vsel %vm919, %v846, 1.0
        %v968 = vsel %vm920, %v848, 1.0
        %v969 = vrcp.pop %v961
        %v970 = vmul.f32 1.0, %v969
        %v971 = vrcp.pop %v962
        %v972 = vmul.f32 1.0, %v971
        %v973 = vrcp.pop %v963
        %v974 = vmul.f32 1.0, %v973
        %v975 = vrcp.pop %v964
        %v976 = vmul.f32 1.0, %v975
        %v977 = vrcp.pop %v965
        %v978 = vmul.f32 1.0, %v977
        %v979 = vrcp.pop %v966
        %v980 = vmul.f32 1.0, %v979
        %v981 = vrcp.pop %v967
        %v982 = vmul.f32 1.0, %v981
        %v983 = vrcp.pop %v968
        %v984 = vmul.f32 1.0, %v983
        %v985 = vsub.f32 0.0, %v889
        %v986 = vsub.f32 0.0, %v890
        %v987 = vsub.f32 0.0, %v891
        %v988 = vsub.f32 0.0, %v892
        %v989 = vsub.f32 0.0, %v893
        %v990 = vsub.f32 0.0, %v894
        %v991 = vsub.f32 0.0, %v895
        %v992 = vsub.f32 0.0, %v896
        %v993 = vmul.f32 %v985, %v970
        %v994 = vmul.f32 %v986, %v972
        %v995 = vmul.f32 %v987, %v974
        %v996 = vmul.f32 %v988, %v976
        %v997 = vmul.f32 %v989, %v978
        %v998 = vmul.f32 %v990, %v980
        %v999 = vmul.f32 %v991, %v982
        %v1000 = vmul.f32 %v992, %v984
        %v1001 = vmul.f32 %v993, %v937
        %v1002 = vmul.f32 %v994, %v938
        %v1003 = vmul.f32 %v995, %v939
        %v1004 = vmul.f32 %v996, %v940
        %v1005 = vmul.f32 %v997, %v941
        %v1006 = vmul.f32 %v998, %v942
        %v1007 = vmul.f32 %v999, %v943
        %v1008 = vmul.f32 %v1000, %v944
        %vm1009 = vcmask 7168
        %v1010 = vsel %vm1009, %v1001, 0.0
        %v1011 = vsel %vm1009, %v1002, 0.0
        %v1012 = vadd.f32 %v1010, %v1011
        %v1013 = vsel %vm1009, %v1003, 0.0
        %v1014 = vadd.f32 %v1012, %v1013
        %v1015 = vsel %vm1009, %v1004, 0.0
        %v1016 = vadd.f32 %v1014, %v1015
        %v1017 = vsel %vm1009, %v1005, 0.0
        %v1018 = vadd.f32 %v1016, %v1017
        %v1019 = vsel %vm1009, %v1006, 0.0
        %v1020 = vadd.f32 %v1018, %v1019
        %v1021 = vsel %vm1009, %v1007, 0.0
        %v1022 = vadd.f32 %v1020, %v1021
        %v1023 = vsel %vm1009, %v1008, 0.0
        %v1024 = vadd.f32 %v1022, %v1023
        %1025 = vadd.xlane.f32.xlu0 %v1024
        %v1026 = vpop.xlane.xlu0 %1025
        %v1027 = vrot.slane %v1026, 4
        %v1028 = vadd.f32 %v1026, %v1027
        %v1029 = vrot.slane %v1028, 2
        %v1030 = vadd.f32 %v1028, %v1029
        %v1031 = vrot.slane %v1030, 1
        %v1032 = vadd.f32 %v1030, %v1031
        %s1033 = vtos %v1032
        %v1034 = vsel %vm1009, %v937, 0.0
        %v1035 = vsel %vm1009, %v938, 0.0
        %v1036 = vadd.f32 %v1034, %v1035
        %v1037 = vsel %vm1009, %v939, 0.0
        %v1038 = vadd.f32 %v1036, %v1037
        %v1039 = vsel %vm1009, %v940, 0.0
        %v1040 = vadd.f32 %v1038, %v1039
        %v1041 = vsel %vm1009, %v941, 0.0
        %v1042 = vadd.f32 %v1040, %v1041
        %v1043 = vsel %vm1009, %v942, 0.0
        %v1044 = vadd.f32 %v1042, %v1043
        %v1045 = vsel %vm1009, %v943, 0.0
        %v1046 = vadd.f32 %v1044, %v1045
        %v1047 = vsel %vm1009, %v944, 0.0
        %v1048 = vadd.f32 %v1046, %v1047
        %1049 = vadd.xlane.f32.xlu0 %v1048
        %v1050 = vpop.xlane.xlu0 %1049
        %v1051 = vrot.slane %v1050, 4
        %v1052 = vadd.f32 %v1050, %v1051
        %v1053 = vrot.slane %v1052, 2
        %v1054 = vadd.f32 %v1052, %v1053
        %v1055 = vrot.slane %v1054, 1
        %v1056 = vadd.f32 %v1054, %v1055
        %s1057 = vtos %v1056
        %v1058 = vsub.f32 0.0, %v897
        %v1059 = vsub.f32 0.0, %v898
        %v1060 = vsub.f32 0.0, %v899
        %v1061 = vsub.f32 0.0, %v900
        %v1062 = vsub.f32 0.0, %v901
        %v1063 = vsub.f32 0.0, %v902
        %v1064 = vsub.f32 0.0, %v903
        %v1065 = vsub.f32 0.0, %v904
        %v1066 = vmul.f32 %v1058, %v970
        %v1067 = vmul.f32 %v1059, %v972
        %v1068 = vmul.f32 %v1060, %v974
        %v1069 = vmul.f32 %v1061, %v976
        %v1070 = vmul.f32 %v1062, %v978
        %v1071 = vmul.f32 %v1063, %v980
        %v1072 = vmul.f32 %v1064, %v982
        %v1073 = vmul.f32 %v1065, %v984
        %v1074 = vmul.f32 %v1066, %v953
        %v1075 = vmul.f32 %v1067, %v954
        %v1076 = vmul.f32 %v1068, %v955
        %v1077 = vmul.f32 %v1069, %v956
        %v1078 = vmul.f32 %v1070, %v957
        %v1079 = vmul.f32 %v1071, %v958
        %v1080 = vmul.f32 %v1072, %v959
        %v1081 = vmul.f32 %v1073, %v960
        %v1082 = vsel %vm1009, %v1074, 0.0
        %v1083 = vsel %vm1009, %v1075, 0.0
        %v1084 = vadd.f32 %v1082, %v1083
        %v1085 = vsel %vm1009, %v1076, 0.0
        %v1086 = vadd.f32 %v1084, %v1085
        %v1087 = vsel %vm1009, %v1077, 0.0
        %v1088 = vadd.f32 %v1086, %v1087
        %v1089 = vsel %vm1009, %v1078, 0.0
        %v1090 = vadd.f32 %v1088, %v1089
        %v1091 = vsel %vm1009, %v1079, 0.0
        %v1092 = vadd.f32 %v1090, %v1091
        %v1093 = vsel %vm1009, %v1080, 0.0
        %v1094 = vadd.f32 %v1092, %v1093
        %v1095 = vsel %vm1009, %v1081, 0.0
        %v1096 = vadd.f32 %v1094, %v1095
        %1097 = vadd.xlane.f32.xlu0 %v1096
        %v1098 = vpop.xlane.xlu0 %1097
        %v1099 = vrot.slane %v1098, 4
        %v1100 = vadd.f32 %v1098, %v1099
        %v1101 = vrot.slane %v1100, 2
        %v1102 = vadd.f32 %v1100, %v1101
        %v1103 = vrot.slane %v1102, 1
        %v1104 = vadd.f32 %v1102, %v1103
        %s1105 = vtos %v1104
        %v1106 = vsel %vm1009, %v953, 0.0
        %v1107 = vsel %vm1009, %v954, 0.0
        %v1108 = vadd.f32 %v1106, %v1107
        %v1109 = vsel %vm1009, %v955, 0.0
        %v1110 = vadd.f32 %v1108, %v1109
        %v1111 = vsel %vm1009, %v956, 0.0
        %v1112 = vadd.f32 %v1110, %v1111
        %v1113 = vsel %vm1009, %v957, 0.0
        %v1114 = vadd.f32 %v1112, %v1113
        %v1115 = vsel %vm1009, %v958, 0.0
        %v1116 = vadd.f32 %v1114, %v1115
        %v1117 = vsel %vm1009, %v959, 0.0
        %v1118 = vadd.f32 %v1116, %v1117
        %v1119 = vsel %vm1009, %v960, 0.0
        %v1120 = vadd.f32 %v1118, %v1119
        %1121 = vadd.xlane.f32.xlu0 %v1120
        %v1122 = vpop.xlane.xlu0 %1121
        %v1123 = vrot.slane %v1122, 4
        %v1124 = vadd.f32 %v1122, %v1123
        %v1125 = vrot.slane %v1124, 2
        %v1126 = vadd.f32 %v1124, %v1125
        %v1127 = vrot.slane %v1126, 1
        %v1128 = vadd.f32 %v1126, %v1127
        %s1129 = vtos %v1128
        %vm1130 = vcmp.eq.s32.totalorder %v631, 0
        %vm1131 = vcmp.eq.s32.totalorder %v631, 1
        %vm1132 = vcmp.eq.s32.totalorder %v631, 2
        %vm1133 = vcmp.eq.s32.totalorder %v631, 3
        %v1134 = vstv %s1129
        %v1135 = vsel %vm1133, %v1134, 0.0
        %v1136 = vstv %s1105
        %v1137 = vsel %vm1132, %v1136, %v1135
        %v1138 = vstv %s1057
        %v1139 = vsel %vm1131, %v1138, %v1137
        %v1140 = vstv %s1033
        %v1141 = vsel %vm1130, %v1140, %v1139
        %vm1142 = vcmp.eq.s32.totalorder %v633, 0
        %v1143 = vsel %vm1142, %v1141, 0.0
        %1144 = vst [vmem:[%s308] sm:$0xff] %v1143
        %s1145 = sand.u32 %s175, 1
        %s1146 = scalar_lea.sflag [#allocation4], %s1145
        %s1147 = sand.u32 %s175, 1
        %s1148 = smul.addr %s1147, 8
        %s1149 = scalar_lea.vmem [#allocation5], %s1148
        // Predicated region
        $region49: #{tpu_custom_call.1} parent=43 // pred_check
          %p1150 = pneg %p185
        $region50: #{tpu_custom_call.1} parent=43 // pred_check_branch
          %1152 = sbr.rel (%p1150) target = $region52
        $region51: #{tpu_custom_call.1} parent=43 // pred_region
          %s1154 = ssub.s32 128, 128
          %1155 = vsyncadd %s1146, %s1154
          %s1156 = smul.addr %s21, 128
          %s1157 = scalar_lea.hbm %s6, %s1156
          %s1159 = sshll.u32 %s1149, 4
          %s1160 = int_to_ptr.vmem [resolvable:$true] %s1159
          %1162 = dma.vmem_to_hbm [thread:$0]  %s1160, 128, %s1157, %s1146
        $region52: #{tpu_custom_call.1} parent=43 // pred_fallthru
          _
      $region44: #{tpu_custom_call.1} parent=5 // pred_fallthru
        _
      %p1163 = scmp.le.s32.totalorder 2, %s16
      // Predicated region
      $region53: #{tpu_custom_call.1} parent=5 // pred_check
        %p1164 = pneg %p1163
      $region54: #{tpu_custom_call.1} parent=5 // pred_check_branch
        %1166 = sbr.rel (%p1164) target = $region56
      $region55: #{tpu_custom_call.1} parent=5 // pred_region
        %s1167 = ssub.s32 %s16, 2
        // Predicated region
        $region57: #{tpu_custom_call.1} parent=55 // pred_check
          %p1168 = pneg %p191
        $region58: #{tpu_custom_call.1} parent=55 // pred_check_branch
          %1170 = sbr.rel (%p1168) target = $region60
        $region59: #{tpu_custom_call.1} parent=55 // pred_region
          %s1171 = sand.u32 %s176, 1
          %s1172 = scalar_lea.sflag [#allocation4], %s1171
          %s1173 = sand.u32 %s176, 1
          %s1174 = smul.addr %s1173, 8
          %s1175 = scalar_lea.vmem [#allocation5], %s1174
          %1176 = dma.done %s1172, 128
        $region60: #{tpu_custom_call.1} parent=55 // pred_fallthru
          _
      $region56: #{tpu_custom_call.1} parent=5 // pred_fallthru
        _
    $region6: #{tpu_custom_call.1} parent=1 // loop_footer
      %s20 = sadd.s32 1, %s16
    $region7: #{tpu_custom_call.1} parent=1 // loop_footer_branch
      %15 = sbr.rel target = $region3
    $region8: #{tpu_custom_call.1} parent=1 // loop_exit
      _
    %1177 = vsyncpa [#allocation3], 1
    %s1178 = scalar_lea.sflag [#allocation3], 1
    %1179 = vsyncpa %s1178, 1
    %1180 = vsyncpa [#allocation4], 1
    %s1181 = scalar_lea.sflag [#allocation4], 1
    %1182 = vsyncpa %s1181, 1

</llo_original>
